<compile_context>
chip_gen: v7x
topology: tpu7x:2x2x1
jax: 0.10.0
libtpu: 0.0.40
codegen_flags: <defaults>
</compile_context>

<pallas_src>
import math

import jax
import jax.numpy as jnp
from jax.experimental import pallas as pl
from jax.experimental.pallas import tpu as pltpu


def _rup(x, m):
    return (x + m - 1) // m * m


def _param_layout(num_states, hidden_size):
    """Row offsets of each parameter slab inside the packed (rows, width) buffer."""
    width = max(128, _rup(hidden_size, 128))
    w1_r0 = 0
    w2_r0 = w1_r0 + _rup(num_states, 8)
    w3_r0 = w2_r0 + _rup(hidden_size, 8)
    b1_r0 = w3_r0 + _rup(hidden_size, 8)
    b2_r0 = b1_r0 + 8            # keep every slab start 8-sublane aligned
    b3_r0 = b2_r0 + 8
    rows = _rup(b3_r0 + 8, 8)
    return rows, width, (w1_r0, w2_r0, w3_r0, b1_r0, b2_r0, b3_r0)


def _make_kernel(num_states, hidden_size, num_actions, offsets):
    od = 2 * num_actions                     # 4 raw head outputs (module hard-codes .view(-1, 4))
    nsq = num_actions * num_actions
    w1_r0, w2_r0, w3_r0, b1_r0, b2_r0, b3_r0 = offsets

    def kernel(x_ref, p_ref, out_ref):
        # Only row 0 of the batch is consumed by the PyTorch forward (nn_out[0]).
        x = x_ref[0:1, :]                                               # (1, num_states)

        w1 = p_ref[w1_r0:w1_r0 + num_states, 0:hidden_size]
        w2 = p_ref[w2_r0:w2_r0 + hidden_size, 0:hidden_size]
        w3 = p_ref[w3_r0:w3_r0 + hidden_size, 0:od]                     # cols pre-permuted [0,2,1,3]
        b1 = p_ref[b1_r0:b1_r0 + 1, 0:hidden_size]
        b2 = p_ref[b2_r0:b2_r0 + 1, 0:hidden_size]
        b3 = p_ref[b3_r0:b3_r0 + 1, 0:od]

        h = jnp.maximum(jnp.dot(x, w1, preferred_element_type=jnp.float32) + b1, 0.0)
        h = jnp.maximum(jnp.dot(h, w2, preferred_element_type=jnp.float32) + b2, 0.0)
        out = jnp.dot(h, w3, preferred_element_type=jnp.float32) + b3   # (1, od) = [mu.., var..] raw

        # tanh on the first half (mu columns), softplus on the second half (var columns).
        col = jax.lax.broadcasted_iota(jnp.int32, (1, od), 1)
        head = jnp.where(col < num_actions, jnp.tanh(out), jnp.logaddexp(out, 0.0))

        # diag_embed(var) flattened row-major -> [var0, 0, 0, var1] (num_actions == 2).
        var0 = head[:, num_actions:num_actions + 1]
        var1 = head[:, od - 1:od]
        ccol = jax.lax.broadcasted_iota(jnp.int32, (1, nsq), 1)
        covf = jnp.where(ccol == 0, var0, jnp.where(ccol == nsq - 1, var1, 0.0))

        # Single lane-contiguous output row: [mu0, mu1, var0, var1, cov00, cov01, cov10, cov11]
        out_ref[:, 0:od] = head
        out_ref[:, od:od + nsq] = covf

    return kernel


def make_policy_forward(num_states, num_actions, hidden_size):
    """Builds the fused forward: (state, packed_params) -> (mu (1,1,2), var (1,1,2), cov (1,1,2,2))."""
    assert num_actions == 2, "PolicyNetwork hard-codes .view(-1, 4), i.e. num_actions == 2"
    od = 2 * num_actions
    nsq = num_actions * num_actions
    rows, width, offsets = _param_layout(num_states, hidden_size)
    kernel = _make_kernel(num_states, hidden_size, num_actions, offsets)
    out_w = od + nsq

    flops = 2 * (num_states * hidden_size + hidden_size * hidden_size + hidden_size * od)
    bytes_accessed = 4 * (2 * num_states + rows * width + out_w)
    vmem = pl.BlockSpec(memory_space=pltpu.MemorySpace.VMEM)

    call = pl.pallas_call(
        kernel,
        out_shape=jax.ShapeDtypeStruct((1, out_w), jnp.float32),
        in_specs=[vmem, vmem],
        out_specs=vmem,
        cost_estimate=pl.CostEstimate(flops=flops, transcendentals=2 * od,
                                      bytes_accessed=bytes_accessed),
    )

    @jax.jit
    def forward(state, packed_params):
        packed = call(state, packed_params)                                   # (1, 8)
        mu = packed[:, 0:num_actions].reshape(1, 1, num_actions)
        var = packed[:, num_actions:od].reshape(1, 1, num_actions)
        cov = packed[:, od:].reshape(1, 1, num_actions, num_actions)
        # TODO(synk): torch.distributions.MultivariateNormal has no Pallas equivalent;
        # (mu, cov) fully parameterize it (var returned as well for convenience).
        return mu, var, cov

    return forward


def init_raw_params(key, num_states, num_actions, hidden_size):
    """PyTorch nn.Linear default init: U(+-1/sqrt(fan_in)); weights stored (in, out)."""
    dims = [(num_states, hidden_size),
            (hidden_size, hidden_size),
            (hidden_size, 2 * num_actions)]
    layers = []
    for fan_in, fan_out in dims:
        key, kw, kb = jax.random.split(key, 3)
        bound = 1.0 / math.sqrt(fan_in)
        w = jax.random.uniform(kw, (fan_in, fan_out), jnp.float32, -bound, bound)
        b = jax.random.uniform(kb, (fan_out,), jnp.float32, -bound, bound)
        layers.append((w, b))
    return tuple(layers)


def pack_params(raw_params, num_states, num_actions, hidden_size):
    """Pack all weights/biases into ONE tile-aligned f32 (rows, 128) buffer.

    Head weight/bias columns are permuted once to [0, 2, 1, 3] so the kernel's mu columns
    (tanh) are the contiguous first half and the var columns (softplus) the second half.
    """
    (w1, b1), (w2, b2), (w3, b3) = raw_params
    od = 2 * num_actions
    perm = jnp.concatenate([jnp.arange(0, od, 2), jnp.arange(1, od, 2)])  # [0, 2, 1, 3]
    w3p, b3p = w3[:, perm], b3[perm]

    rows, width, (w1_r0, w2_r0, w3_r0, b1_r0, b2_r0, b3_r0) = _param_layout(
        num_states, hidden_size)
    buf = jnp.zeros((rows, width), jnp.float32)
    buf = buf.at[w1_r0:w1_r0 + num_states, 0:hidden_size].set(w1)
    buf = buf.at[w2_r0:w2_r0 + hidden_size, 0:hidden_size].set(w2)
    buf = buf.at[w3_r0:w3_r0 + hidden_size, 0:od].set(w3p)
    buf = buf.at[b1_r0, 0:hidden_size].set(b1)
    buf = buf.at[b2_r0, 0:hidden_size].set(b2)
    buf = buf.at[b3_r0, 0:od].set(b3p)
    return buf


def _reference_forward(state, raw_params):
    """Pure-JAX mirror of the PyTorch module's forward (unpermuted, unpacked params)."""
    (w1, b1), (w2, b2), (w3, b3) = raw_params
    x = jnp.maximum(state @ w1 + b1, 0.0)
    x = jnp.maximum(x @ w2 + b2, 0.0)
    out = (x @ w3 + b3).reshape(-1, 4)
    row0 = out[0]
    mu = jnp.tanh(jnp.stack([row0[0], row0[2]])).reshape(1, 1, 2)
    var = jax.nn.softplus(jnp.stack([row0[1], row0[3]])).reshape(1, 1, 2)
    cov = var[..., None] * jnp.eye(2, dtype=var.dtype)          # diag_embed(var) -> (1,1,2,2)
    return mu, var, cov


if __name__ == "__main__":
    num_states, num_actions, hidden_size = 8, 2, 32
    batch = 2

    key = jax.random.PRNGKey(0)
    key, kx = jax.random.split(key)
    state = jax.random.normal(kx, (batch, num_states), jnp.float32)

    raw_params = init_raw_params(key, num_states, num_actions, hidden_size)
    packed_params = pack_params(raw_params, num_states, num_actions, hidden_size)

    forward = make_policy_forward(num_states, num_actions, hidden_size)
    mu, var, cov = forward(state, packed_params)
    jax.block_until_ready((mu, var, cov))

    assert mu.shape == (1, 1, 2)
    assert var.shape == (1, 1, 2)
    assert cov.shape == (1, 1, 2, 2)
    assert bool(jnp.all(var > 0.0))

    mu_r, var_r, cov_r = _reference_forward(state, raw_params)
    assert bool(jnp.allclose(mu, mu_r, atol=1e-4, rtol=1e-4))
    assert bool(jnp.allclose(var, var_r, atol=1e-4, rtol=1e-4))
    assert bool(jnp.allclose(cov, cov_r, atol=1e-4, rtol=1e-4))

    print("KERNEL_OK")
</pallas_src>

<mosaic_0001>
module attributes {stable_mosaic.version = 11 : i64} {
  func.func @kernel(%arg0: memref<2x8xf32, #tpu.memory_space<vmem>>, %arg1: memref<96x128xf32, #tpu.memory_space<vmem>>, %arg2: memref<1x8xf32, #tpu.memory_space<vmem>>) attributes {dimension_semantics = [], scalar_prefetch = 0 : i64, scratch_operands = 0 : i64, tpu.core_type = #tpu.core_type<tc>} {
    %c0 = arith.constant 0 : index
    %c0_0 = arith.constant 0 : index
    %0 = vector.load %arg0[%c0, %c0_0] : memref<2x8xf32, #tpu.memory_space<vmem>>, vector<1x8xf32>
    %c0_1 = arith.constant 0 : index
    %c0_2 = arith.constant 0 : index
    %1 = vector.load %arg1[%c0_1, %c0_2] : memref<96x128xf32, #tpu.memory_space<vmem>>, vector<8x32xf32>
    %c8 = arith.constant 8 : index
    %c0_3 = arith.constant 0 : index
    %2 = vector.load %arg1[%c8, %c0_3] : memref<96x128xf32, #tpu.memory_space<vmem>>, vector<32x32xf32>
    %c40 = arith.constant 40 : index
    %c0_4 = arith.constant 0 : index
    %3 = vector.load %arg1[%c40, %c0_4] : memref<96x128xf32, #tpu.memory_space<vmem>>, vector<32x4xf32>
    %c72 = arith.constant 72 : index
    %c0_5 = arith.constant 0 : index
    %4 = vector.load %arg1[%c72, %c0_5] : memref<96x128xf32, #tpu.memory_space<vmem>>, vector<1x32xf32>
    %c80 = arith.constant 80 : index
    %c0_6 = arith.constant 0 : index
    %5 = vector.load %arg1[%c80, %c0_6] : memref<96x128xf32, #tpu.memory_space<vmem>>, vector<1x32xf32>
    %c88 = arith.constant 88 : index
    %c0_7 = arith.constant 0 : index
    %6 = vector.load %arg1[%c88, %c0_7] : memref<96x128xf32, #tpu.memory_space<vmem>>, vector<1x4xf32>
    %cst = arith.constant dense<0.000000e+00> : vector<1x32xf32>
    %7 = tpu.matmul %0, %1, %cst {dimension_numbers = #tpu.dot_dimension_numbers<[1], [0], [0], [1], [0, 0, 1, 1], [], []>} : vector<1x8xf32>, vector<8x32xf32>, vector<1x32xf32> -> vector<1x32xf32>
    %8 = arith.addf %7, %4 : vector<1x32xf32>
    %cst_8 = arith.constant 0.000000e+00 : f32
    %9 = vector.broadcast %cst_8 : f32 to vector<1x32xf32>
    %10 = arith.maximumf %8, %9 : vector<1x32xf32>
    %cst_9 = arith.constant dense<0.000000e+00> : vector<1x32xf32>
    %11 = tpu.matmul %10, %2, %cst_9 {dimension_numbers = #tpu.dot_dimension_numbers<[1], [0], [0], [1], [0, 0, 1, 1], [], []>} : vector<1x32xf32>, vector<32x32xf32>, vector<1x32xf32> -> vector<1x32xf32>
    %12 = arith.addf %11, %5 : vector<1x32xf32>
    %cst_10 = arith.constant 0.000000e+00 : f32
    %13 = vector.broadcast %cst_10 : f32 to vector<1x32xf32>
    %14 = arith.maximumf %12, %13 : vector<1x32xf32>
    %cst_11 = arith.constant dense<0.000000e+00> : vector<1x4xf32>
    %15 = tpu.matmul %14, %3, %cst_11 {dimension_numbers = #tpu.dot_dimension_numbers<[1], [0], [0], [1], [0, 0, 1, 1], [], []>} : vector<1x32xf32>, vector<32x4xf32>, vector<1x4xf32> -> vector<1x4xf32>
    %16 = arith.addf %15, %6 : vector<1x4xf32>
    %17 = tpu.iota {dimensions = array<i32: 1>} : vector<1x4xi32>
    %c2_i32 = arith.constant 2 : i32
    %18 = vector.broadcast %c2_i32 : i32 to vector<1x4xi32>
    %19 = arith.cmpi slt, %17, %18 : vector<1x4xi32>
    %20 = math.tanh %16 : vector<1x4xf32>
    %cst_12 = arith.constant 0.000000e+00 : f32
    %21 = vector.broadcast %cst_12 : f32 to vector<1x4xf32>
    %22 = arith.maximumf %16, %21 : vector<1x4xf32>
    %23 = vector.broadcast %cst_12 : f32 to vector<1x4xf32>
    %24 = arith.subf %16, %23 : vector<1x4xf32>
    %25 = arith.cmpf one, %24, %24 : vector<1x4xf32>
    %26 = vector.broadcast %cst_12 : f32 to vector<1x4xf32>
    %27 = arith.addf %16, %26 : vector<1x4xf32>
    %28 = math.absf %24 : vector<1x4xf32>
    %cst_13 = arith.constant 0.000000e+00 : f32
    %29 = vector.broadcast %cst_13 : f32 to vector<1x4xf32>
    %30 = arith.subf %29, %28 : vector<1x4xf32>
    %31 = math.exp %30 : vector<1x4xf32>
    %32 = math.log1p %31 : vector<1x4xf32>
    %33 = arith.addf %22, %32 : vector<1x4xf32>
    %34 = arith.select %25, %27, %33 : vector<1x4xi1>, vector<1x4xf32>
    %35 = arith.select %19, %20, %34 : vector<1x4xi1>, vector<1x4xf32>
    %36 = vector.extract_strided_slice %35 {offsets = [0, 2], sizes = [1, 1], strides = [1, 1]} : vector<1x4xf32> to vector<1x1xf32>
    %37 = vector.extract_strided_slice %35 {offsets = [0, 3], sizes = [1, 1], strides = [1, 1]} : vector<1x4xf32> to vector<1x1xf32>
    %38 = tpu.iota {dimensions = array<i32: 1>} : vector<1x4xi32>
    %c0_i32 = arith.constant 0 : i32
    %39 = vector.broadcast %c0_i32 : i32 to vector<1x4xi32>
    %40 = arith.cmpi eq, %38, %39 : vector<1x4xi32>
    %c3_i32 = arith.constant 3 : i32
    %41 = vector.broadcast %c3_i32 : i32 to vector<1x4xi32>
    %42 = arith.cmpi eq, %38, %41 : vector<1x4xi32>
    %cst_14 = arith.constant 0.000000e+00 : f32
    %43 = vector.shape_cast %37 : vector<1x1xf32> to vector<1x1xf32>
    %44 = vector.broadcast %43 : vector<1x1xf32> to vector<1x4xf32>
    %45 = vector.broadcast %cst_14 : f32 to vector<1x4xf32>
    %46 = arith.select %42, %44, %45 : vector<1x4xi1>, vector<1x4xf32>
    %47 = vector.shape_cast %36 : vector<1x1xf32> to vector<1x1xf32>
    %48 = vector.broadcast %47 : vector<1x1xf32> to vector<1x4xf32>
    %49 = arith.select %40, %48, %46 : vector<1x4xi1>, vector<1x4xf32>
    %c0_15 = arith.constant 0 : index
    %c0_16 = arith.constant 0 : index
    %50 = vector.load %arg2[%c0_15, %c0_16] : memref<1x8xf32, #tpu.memory_space<vmem>>, vector<1x4xf32>
    tpu.vector_store %arg2[%c0_15, %c0_16], %35 {strides = array<i32>} : memref<1x8xf32, #tpu.memory_space<vmem>>, vector<1x4xf32>,
    %c0_17 = arith.constant 0 : index
    %c4 = arith.constant 4 : index
    %51 = vector.load %arg2[%c0_17, %c4] : memref<1x8xf32, #tpu.memory_space<vmem>>, vector<1x4xf32>
    tpu.vector_store %arg2[%c0_17, %c4], %49 {strides = array<i32>} : memref<1x8xf32, #tpu.memory_space<vmem>>, vector<1x4xf32>,
    return
  }
}

</mosaic_0001>

<llo_original>
// kernel: forward.1
$region0: #{forward.1}
  #allocation0 [shape = 'u32[]', space=smem, size = 0x4, offset = 0x4, fixed_abs, tag = 'smem constant byte address 0x4 - core index']
  #allocation1 [shape = 'u32[144,128]{1,0:T(1,128)}', space=vmem, size = 0x12000, scoped, tag = 'internal scratch']
  %s0 = inlined_call_operand.hbm [shape: f32[2,8], index: 0, kind: input, shape index: {}]
  %s1 = inlined_call_operand.hbm [shape: f32[96,128], index: 1, kind: input, shape index: {}]
  %s2 = inlined_call_operand.vmem [shape: f32[1,8], index: 2, kind: output, shape index: {}]
  %s3 = sld [smem:[#allocation0]]
  $region26: #{forward.1} parent=0
    _
  %s5 = ssub.s32 1, %s3
  %s6 = scalar_select 0, %s5, %s3
  $region1: #{forward.1} parent=0
    #allocation2 [shape = 'u8[1024]{0}', space=vmem, size = 0x400, scoped, tag = 'input window, operand 0, single buffered']
    #allocation3 [shape = 's32[1]{0}', space=sflag, size = 0x4, scoped, tag = 'scoped memory for forward.1']
    #allocation4 [shape = 'u8[49152]{0}', space=vmem, size = 0xc000, scoped, tag = 'input window, operand 1, single buffered']
    #allocation5 [shape = 's32[1]{0}', space=sflag, size = 0x4, scoped, tag = 'scoped memory for forward.1']
    %7 = vsyncpa [#allocation3], 0
    %8 = vsyncpa [#allocation5], 0
    // Predicated region
    $region2: #{forward.1} parent=1 // pred_check
      _
    $region3: #{forward.1} parent=1 // pred_check_branch
      %10 = sbr.rel (0) target = $region5
    $region4: #{forward.1} parent=1 // pred_region
      %s12 = ssub.s32 32, 32
      %13 = vsyncadd [#allocation3], %s12
      %s15 = sshll.u32 [#allocation2], 4
      %s16 = int_to_ptr.vmem [resolvable:$true] %s15
      %18 = dma.hbm_to_vmem [thread:$0]  %s0, 32, %s16, [#allocation3]
    $region5: #{forward.1} parent=1 // pred_fallthru
      _
    // Predicated region
    $region6: #{forward.1} parent=1 // pred_check
      _
    $region7: #{forward.1} parent=1 // pred_check_branch
      %20 = sbr.rel (0) target = $region9
    $region8: #{forward.1} parent=1 // pred_region
      %s22 = ssub.s32 1536, 1536
      %23 = vsyncadd [#allocation5], %s22
      %s24 = sshll.u32 [#allocation4], 4
      %s25 = int_to_ptr.vmem [resolvable:$true] %s24
      %30 = dma.hbm_to_vmem [thread:$0]  %s1, 1536, %s25, [#allocation5], 128, 128, 8
    $region9: #{forward.1} parent=1 // pred_fallthru
      _
    // Predicated region
    $region10: #{forward.1} parent=1 // pred_check
      _
    $region11: #{forward.1} parent=1 // pred_check_branch
      %32 = sbr.rel (0) target = $region13
    $region12: #{forward.1} parent=1 // pred_region
      %33 = dma.done [#allocation3], 32
    $region13: #{forward.1} parent=1 // pred_fallthru
      _
    // Predicated region
    $region14: #{forward.1} parent=1 // pred_check
      _
    $region15: #{forward.1} parent=1 // pred_check_branch
      %35 = sbr.rel (0) target = $region17
    $region16: #{forward.1} parent=1 // pred_region
      %36 = dma.done [#allocation5], 1536
    $region17: #{forward.1} parent=1 // pred_fallthru
      _
    %v37 = vld [vmem:[#allocation2] sm:$0x1]
    %v38 = vld [vmem:[#allocation4] sm:$0xff]
    %v39 = vld [vmem:[#allocation4 + $0x8] sm:$0xff]
    %v40 = vld [vmem:[#allocation4 + $0x10] sm:$0xff]
    %v41 = vld [vmem:[#allocation4 + $0x18] sm:$0xff]
    %v42 = vld [vmem:[#allocation4 + $0x20] sm:$0xff]
    %v43 = vld [vmem:[#allocation4 + $0x28] sm:$0xff]
    %v44 = vld [vmem:[#allocation4 + $0x30] sm:$0xff]
    %v45 = vld [vmem:[#allocation4 + $0x38] sm:$0xff]
    %v46 = vld [vmem:[#allocation4 + $0x40] sm:$0xff]
    %v47 = vld [vmem:[#allocation4 + $0x48] sm:$0x1]
    %v48 = vld [vmem:[#allocation4 + $0x50] sm:$0x1]
    %v49 = vld [vmem:[#allocation4 + $0x58] sm:$0x1]
    %vm50 = vcmask 64512
    %v52 = vsel %vm50, %v37, 0
    %54 = vmatprep.subr.mxu0 0.0
    %55 = vmatpush1.msra.mxu0 %v38
    %56 = vmatprep.subr.mxu0 0.0
    %57 = vmatpush1.msra.mxu0 0.0
    %58 = vmatprep.subr.mxu0 0.0
    %59 = vmatpush1.msra.mxu0 0.0
    %60 = vmatprep.subr.mxu0 0.0
    %61 = vmatpush1.msra.mxu0 0.0
    %62 = vmatprep.subr.mxu0 0.0
    %63 = vmatpush1.msra.mxu0 0.0
    %64 = vmatprep.subr.mxu0 0.0
    %65 = vmatpush1.msra.mxu0 0.0
    %66 = vmatprep.subr.mxu0 0.0
    %67 = vmatpush1.msra.mxu0 0.0
    %68 = vmatprep.subr.mxu0 0.0
    %69 = vmatpush1.msra.mxu0 0.0
    %70 = vmatprep.subr.mxu0 0.0
    %71 = vmatpush1.msra.mxu0 0.0
    %72 = vmatprep.subr.mxu0 0.0
    %73 = vmatpush1.msra.mxu0 0.0
    %74 = vmatprep.subr.mxu0 0.0
    %75 = vmatpush1.msra.mxu0 0.0
    %76 = vmatprep.subr.mxu0 0.0
    %77 = vmatpush1.msra.mxu0 0.0
    %78 = vmatprep.subr.mxu0 0.0
    %79 = vmatpush1.msra.mxu0 0.0
    %80 = vmatprep.subr.mxu0 0.0
    %81 = vmatpush1.msra.mxu0 0.0
    %82 = vmatprep.subr.mxu0 0.0
    %83 = vmatpush1.msra.mxu0 0.0
    %84 = vmatprep.subr.mxu0 0.0
    %85 = vmatpush1.msra.mxu0 0.0
    %86 = vmatprep.subr.mxu0 0.0
    %87 = vmatpush1.msra.mxu0 0.0
    %88 = vmatprep.subr.mxu0 0.0
    %89 = vmatpush1.msra.mxu0 0.0
    %90 = vmatprep.subr.mxu0 0.0
    %91 = vmatpush1.msra.mxu0 0.0
    %92 = vmatprep.subr.mxu0 0.0
    %93 = vmatpush1.msra.mxu0 0.0
    %94 = vmatprep.subr.mxu0 0.0
    %95 = vmatpush1.msra.mxu0 0.0
    %96 = vmatprep.subr.mxu0 0.0
    %97 = vmatpush1.msra.mxu0 0.0
    %98 = vmatprep.subr.mxu0 0.0
    %99 = vmatpush1.msra.mxu0 0.0
    %100 = vmatprep.subr.mxu0 0.0
    %101 = vmatpush1.msra.mxu0 0.0
    %102 = vmatprep.subr.mxu0 0.0
    %103 = vmatpush1.msra.mxu0 0.0
    %104 = vmatprep.subr.mxu0 0.0
    %105 = vmatpush1.msra.mxu0 0.0
    %106 = vmatprep.subr.mxu0 0.0
    %107 = vmatpush1.msra.mxu0 0.0
    %108 = vmatprep.subr.mxu0 0.0
    %109 = vmatpush1.msra.mxu0 0.0
    %110 = vmatprep.subr.mxu0 0.0
    %111 = vmatpush1.msra.mxu0 0.0
    %112 = vmatprep.subr.mxu0 0.0
    %113 = vmatpush1.msra.mxu0 0.0
    %114 = vmatprep.subr.mxu0 0.0
    %115 = vmatpush1.msra.mxu0 0.0
    %116 = vmatprep.subr.mxu0 0.0
    %117 = vmatpush1.msra.mxu0 0.0
    %118 = vmatprep.mubr.f32.mxu0 0.0
    %119 = vmatmul.mubr.f32.gmra.mrb[0].mxu0 %v52
    %v120 = vpop.f32.mrb[0].mxu0
    %v121 = vadd.f32 %v47, %v120
    %v122 = vpop.f32.mrb[0].mxu0
    %123 = vdwg.mxu0
    %v124 = vmax.f32 %v121, 0.0
    %vm125 = vcmask 261120
    %v127 = vsel %vm125, %v124, 0
    %129 = vmatprep.subr.mxu0 0.0
    %130 = vmatpush1.msra.mxu0 %v39
    %131 = vmatprep.subr.mxu0 0.0
    %132 = vmatpush1.msra.mxu0 %v40
    %133 = vmatprep.subr.mxu0 0.0
    %134 = vmatpush1.msra.mxu0 %v41
    %135 = vmatprep.subr.mxu0 0.0
    %136 = vmatpush1.msra.mxu0 %v42
    %137 = vmatprep.subr.mxu0 0.0
    %138 = vmatpush1.msra.mxu0 0.0
    %139 = vmatprep.subr.mxu0 0.0
    %140 = vmatpush1.msra.mxu0 0.0
    %141 = vmatprep.subr.mxu0 0.0
    %142 = vmatpush1.msra.mxu0 0.0
    %143 = vmatprep.subr.mxu0 0.0
    %144 = vmatpush1.msra.mxu0 0.0
    %145 = vmatprep.subr.mxu0 0.0
    %146 = vmatpush1.msra.mxu0 0.0
    %147 = vmatprep.subr.mxu0 0.0
    %148 = vmatpush1.msra.mxu0 0.0
    %149 = vmatprep.subr.mxu0 0.0
    %150 = vmatpush1.msra.mxu0 0.0
    %151 = vmatprep.subr.mxu0 0.0
    %152 = vmatpush1.msra.mxu0 0.0
    %153 = vmatprep.subr.mxu0 0.0
    %154 = vmatpush1.msra.mxu0 0.0
    %155 = vmatprep.subr.mxu0 0.0
    %156 = vmatpush1.msra.mxu0 0.0
    %157 = vmatprep.subr.mxu0 0.0
    %158 = vmatpush1.msra.mxu0 0.0
    %159 = vmatprep.subr.mxu0 0.0
    %160 = vmatpush1.msra.mxu0 0.0
    %161 = vmatprep.subr.mxu0 0.0
    %162 = vmatpush1.msra.mxu0 0.0
    %163 = vmatprep.subr.mxu0 0.0
    %164 = vmatpush1.msra.mxu0 0.0
    %165 = vmatprep.subr.mxu0 0.0
    %166 = vmatpush1.msra.mxu0 0.0
    %167 = vmatprep.subr.mxu0 0.0
    %168 = vmatpush1.msra.mxu0 0.0
    %169 = vmatprep.subr.mxu0 0.0
    %170 = vmatpush1.msra.mxu0 0.0
    %171 = vmatprep.subr.mxu0 0.0
    %172 = vmatpush1.msra.mxu0 0.0
    %173 = vmatprep.subr.mxu0 0.0
    %174 = vmatpush1.msra.mxu0 0.0
    %175 = vmatprep.subr.mxu0 0.0
    %176 = vmatpush1.msra.mxu0 0.0
    %177 = vmatprep.subr.mxu0 0.0
    %178 = vmatpush1.msra.mxu0 0.0
    %179 = vmatprep.subr.mxu0 0.0
    %180 = vmatpush1.msra.mxu0 0.0
    %181 = vmatprep.subr.mxu0 0.0
    %182 = vmatpush1.msra.mxu0 0.0
    %183 = vmatprep.subr.mxu0 0.0
    %184 = vmatpush1.msra.mxu0 0.0
    %185 = vmatprep.subr.mxu0 0.0
    %186 = vmatpush1.msra.mxu0 0.0
    %187 = vmatprep.subr.mxu0 0.0
    %188 = vmatpush1.msra.mxu0 0.0
    %189 = vmatprep.subr.mxu0 0.0
    %190 = vmatpush1.msra.mxu0 0.0
    %191 = vmatprep.subr.mxu0 0.0
    %192 = vmatpush1.msra.mxu0 0.0
    %193 = vmatprep.mubr.f32.mxu0 0.0
    %194 = vmatmul.mubr.f32.gmra.mrb[0].mxu0 %v127
    %v195 = vpop.f32.mrb[0].mxu0
    %v196 = vadd.f32 %v48, %v195
    %v197 = vpop.f32.mrb[0].mxu0
    %198 = vdwg.mxu0
    %v199 = vmax.f32 %v196, 0.0
    %v201 = vsel %vm125, %v199, 0
    %203 = vmatprep.subr.mxu0 0.0
    %204 = vmatpush1.msra.mxu0 %v43
    %205 = vmatprep.subr.mxu0 0.0
    %206 = vmatpush1.msra.mxu0 %v44
    %207 = vmatprep.subr.mxu0 0.0
    %208 = vmatpush1.msra.mxu0 %v45
    %209 = vmatprep.subr.mxu0 0.0
    %210 = vmatpush1.msra.mxu0 %v46
    %211 = vmatprep.subr.mxu0 0.0
    %212 = vmatpush1.msra.mxu0 0.0
    %213 = vmatprep.subr.mxu0 0.0
    %214 = vmatpush1.msra.mxu0 0.0
    %215 = vmatprep.subr.mxu0 0.0
    %216 = vmatpush1.msra.mxu0 0.0
    %217 = vmatprep.subr.mxu0 0.0
    %218 = vmatpush1.msra.mxu0 0.0
    %219 = vmatprep.subr.mxu0 0.0
    %220 = vmatpush1.msra.mxu0 0.0
    %221 = vmatprep.subr.mxu0 0.0
    %222 = vmatpush1.msra.mxu0 0.0
    %223 = vmatprep.subr.mxu0 0.0
    %224 = vmatpush1.msra.mxu0 0.0
    %225 = vmatprep.subr.mxu0 0.0
    %226 = vmatpush1.msra.mxu0 0.0
    %227 = vmatprep.subr.mxu0 0.0
    %228 = vmatpush1.msra.mxu0 0.0
    %229 = vmatprep.subr.mxu0 0.0
    %230 = vmatpush1.msra.mxu0 0.0
    %231 = vmatprep.subr.mxu0 0.0
    %232 = vmatpush1.msra.mxu0 0.0
    %233 = vmatprep.subr.mxu0 0.0
    %234 = vmatpush1.msra.mxu0 0.0
    %235 = vmatprep.subr.mxu0 0.0
    %236 = vmatpush1.msra.mxu0 0.0
    %237 = vmatprep.subr.mxu0 0.0
    %238 = vmatpush1.msra.mxu0 0.0
    %239 = vmatprep.subr.mxu0 0.0
    %240 = vmatpush1.msra.mxu0 0.0
    %241 = vmatprep.subr.mxu0 0.0
    %242 = vmatpush1.msra.mxu0 0.0
    %243 = vmatprep.subr.mxu0 0.0
    %244 = vmatpush1.msra.mxu0 0.0
    %245 = vmatprep.subr.mxu0 0.0
    %246 = vmatpush1.msra.mxu0 0.0
    %247 = vmatprep.subr.mxu0 0.0
    %248 = vmatpush1.msra.mxu0 0.0
    %249 = vmatprep.subr.mxu0 0.0
    %250 = vmatpush1.msra.mxu0 0.0
    %251 = vmatprep.subr.mxu0 0.0
    %252 = vmatpush1.msra.mxu0 0.0
    %253 = vmatprep.subr.mxu0 0.0
    %254 = vmatpush1.msra.mxu0 0.0
    %255 = vmatprep.subr.mxu0 0.0
    %256 = vmatpush1.msra.mxu0 0.0
    %257 = vmatprep.subr.mxu0 0.0
    %258 = vmatpush1.msra.mxu0 0.0
    %259 = vmatprep.subr.mxu0 0.0
    %260 = vmatpush1.msra.mxu0 0.0
    %261 = vmatprep.subr.mxu0 0.0
    %262 = vmatpush1.msra.mxu0 0.0
    %263 = vmatprep.subr.mxu0 0.0
    %264 = vmatpush1.msra.mxu0 0.0
    %265 = vmatprep.subr.mxu0 0.0
    %266 = vmatpush1.msra.mxu0 0.0
    %267 = vmatprep.mubr.f32.mxu0 0.0
    %268 = vmatmul.mubr.f32.gmra.mrb[0].mxu0 %v201
    %v269 = vpop.f32.mrb[0].mxu0
    %v270 = vadd.f32 %v49, %v269
    %v271 = vpop.f32.mrb[0].mxu0
    %272 = vdwg.mxu0
    %v273 = vlaneseq
    %v274 = vand.u32 %v273, 127
    %vm275 = vcmp.lt.s32.totalorder %v274, 2
    %v276 = vtanh.pop %v270
    %v277 = vmax.f32 %v270, 0.0
    %vm278 = vcmp.ne.f32.partialorder %v270, %v270
    %v279 = vadd.f32 %v270, 0.0
    %v280 = vand.u32 2147483647, %v270
    %v281 = vsub.f32 0.0, %v280
    %v282 = vmul.f32 %v281, 1.442695
    %v283 = vpow.pop %v282
    %v284 = vadd.f32 %v283, 1.0
    %v285 = vlog2.pop %v284
    %v286 = vmul.f32 %v285, 0.6931472
    %v287 = vmul.f32 -0.5, %v283
    %v288 = vadd.f32 %v287, 1.0
    %v289 = vmul.f32 %v288, %v283
    %v290 = vand.u32 2147483647, %v283
    %vm291 = vcmp.lt.f32.partialorder %v290, 0.0004427343
    %v292 = vsel %vm291, %v289, %v286
    %v293 = vadd.f32 %v277, %v292
    %v294 = vsel %vm278, %v279, %v293
    %v295 = vsel %vm275, %v276, %v294
    %vm296 = vcmp.eq.s32.totalorder %v274, 0
    %vm297 = vcmp.eq.s32.totalorder %v274, 3
    %299 = vset.pattern.permute.xlu0 3
    %300 = vperm.xlu0 %299, %v295
    %v301 = vpop.permute.xlu0 %300
    %v303 = vsel %vm297, %v301, 0.0
    %304 = vset.pattern.permute.xlu0 2
    %305 = vperm.xlu0 %304, %v295
    %v306 = vpop.permute.xlu0 %305
    %v308 = vsel %vm296, %v306, %v303
    %vm309 = vcmask 24576
    %310 = vst.msk [vmem:[%s2] sm:$0x1] %vm309, %v295
    %312 = vrot.lane.b32.xlu0 %v308, 4
    %v313 = vpop.permute.xlu0 %312
    %vm315 = vcmask 57376
    %316 = vst.msk [vmem:[%s2] sm:$0x1] %vm315, %v313
    // Predicated region
    $region18: #{forward.1} parent=1 // pred_check
      _
    $region19: #{forward.1} parent=1 // pred_check_branch
      %318 = sbr.rel (0) target = $region21
    $region20: #{forward.1} parent=1 // pred_region
      _
    $region21: #{forward.1} parent=1 // pred_fallthru
      _
    // Predicated region
    $region22: #{forward.1} parent=1 // pred_check
      _
    $region23: #{forward.1} parent=1 // pred_check_branch
      %320 = sbr.rel (0) target = $region25
    $region24: #{forward.1} parent=1 // pred_region
      _
    $region25: #{forward.1} parent=1 // pred_fallthru
      _
    %321 = vsyncpa [#allocation3], 1
    %322 = vsyncpa [#allocation5], 1

</llo_original>
